<compile_context>
chip_gen: v6e
topology: v6e:2x2x1
jax: 0.10.0
libtpu: 0.0.40
codegen_flags: <defaults>
</compile_context>

<pallas_src>
import jax
import jax.numpy as jnp
from jax.experimental import pallas as pl
from jax.experimental.pallas import tpu as pltpu


def _round_up(a, m):
    return ((a + m - 1) // m) * m


def _disc_kernel(x_ref, w1_ref, b1_ref, w2_ref, b2_ref, o_ref):
    # ---- layer 1: (TBp, p*L) @ (p*L, p*H) on the MXU, bf16 operands, f32 acc.
    h = jnp.dot(x_ref[...].astype(jnp.bfloat16), w1_ref[...],
                preferred_element_type=jnp.float32)          # (TBp, p*H) f32
    h = h + b1_ref[...]                                      # bias (1, p*H), f32 VPU
    h = jnp.where(h > 0, h, 0.2 * h)                         # leaky_relu(0.2)

    # ---- layer 2: (TBp, p*H) @ (p*H, p) — natural MXU form, no h relayout.
    y = jnp.dot(h.astype(jnp.bfloat16), w2_ref[...],
                preferred_element_type=jnp.float32)          # (TBp, p) f32
    y = jax.nn.sigmoid(y + b2_ref[0])                        # f32 (EUP)
    o_ref[...] = y.astype(o_ref.dtype)


_VMEM_LIMIT_BYTES = 48 * 1024 * 1024    # <= physical on v5e/v6e (128 MiB) and v7x (64 MiB/TC)
_VMEM_TILE_BUDGET = 24 * 1024 * 1024    # working budget for tile sizing (headroom for temps)


def mnist_discriminator(x, w1, b1, w2, b2, *, block_b=16384):
    """x: (B, L); w1: (L, H); b1: (1, H); w2: (H, 1); b2: (1, 1). Returns (B, 1).

    Weights are stored as (in_features, out_features), so y = x @ W + b matches
    torch.nn.Linear(x) = x @ weight.T + bias.  x may be float32 or bfloat16.
    """
    B, L = x.shape
    H = w1.shape[1]
    out_dtype = x.dtype
    itemsize = x.dtype.itemsize

    # ----- lane packing: fold p batch rows into one 128-lane row ---------------
    p = 128 // L if (L <= 128 and 128 % L == 0) else 1
    if p > 1 and B % p != 0:
        p = 1                                   # ragged pack -> unpacked fallback (still correct)

    eye_p = jnp.eye(p, dtype=jnp.float32)
    w1_bd = jnp.kron(eye_p, w1.astype(jnp.float32)).astype(jnp.bfloat16)   # (p*L, p*H)
    w2_bd = jnp.kron(eye_p, w2.astype(jnp.float32)).astype(jnp.bfloat16)   # (p*H, p)
    b1_t = jnp.tile(b1.reshape(1, H).astype(jnp.float32), (1, p))          # (1, p*H)
    b2_s = b2.reshape(1).astype(jnp.float32)                               # SMEM scalar

    Bp = B // p
    x_v = x.reshape(Bp, p * L)                  # free row-major reshape (no HBM pass)

    # ----- tile sizing against the lane-padded VMEM footprint ------------------
    # per packed row: x (double-buffered) + out staging (padded to 128 lanes,
    # double-buffered) + h and elementwise temporaries.
    bytes_per_row = (_round_up(p * L, 128) * itemsize * 2
                     + 128 * 4 * 2
                     + _round_up(p * H, 128) * 4 * 3)
    tbp_cap = max(8, (_VMEM_TILE_BUDGET // bytes_per_row) // 8 * 8)
    tbp = max(8, (min(max(block_b // p, 8), tbp_cap) // 8) * 8)

    if Bp <= tbp:
        tbp, grid_b = Bp, 1                     # single tile: block == full array dims
    else:
        # large B: ensure >= ~8 grid steps so both v7x TensorCores stay loaded.
        tbp = min(tbp, _round_up(pl.cdiv(Bp, 8), 8))
        grid_b = pl.cdiv(Bp, tbp)               # ragged tail clamped by Pallas (no jnp.pad)

    cost = pl.CostEstimate(
        flops=2 * B * L * H + 2 * B * H,
        transcendentals=B,
        bytes_accessed=(x.size * itemsize + B * out_dtype.itemsize
                        + w1_bd.size * 2 + w2_bd.size * 2 + (p * H + 1) * 4),
    )

    out = pl.pallas_call(
        _disc_kernel,
        out_shape=jax.ShapeDtypeStruct((Bp, p), out_dtype),
        grid=(grid_b,),
        in_specs=[
            pl.BlockSpec((tbp, p * L), lambda i: (i, 0)),        # x: streamed batch tiles
            pl.BlockSpec((p * L, p * H), lambda i: (0, 0)),      # block-diag W1: resident
            pl.BlockSpec((1, p * H), lambda i: (0, 0)),          # b1 (tiled): resident
            pl.BlockSpec((p * H, p), lambda i: (0, 0)),          # block-diag W2: resident
            pl.BlockSpec(memory_space=pltpu.MemorySpace.SMEM),   # b2: SMEM scalar
        ],
        out_specs=pl.BlockSpec((tbp, p), lambda i: (i, 0)),
        compiler_params=pltpu.CompilerParams(
            dimension_semantics=("parallel",),                   # megacore split on v7x
            vmem_limit_bytes=_VMEM_LIMIT_BYTES),
        cost_estimate=cost,
    )(x_v, w1_bd, b1_t, w2_bd, b2_s)

    # (Bp, p) is exactly the row-major view of (B, 1): layout plumbing only.
    return out.reshape(B, 1)


def init_params(key, latent_size, dtype=jnp.float32):
    """Deterministic synthetic init matching nn.Linear shapes (stored transposed)."""
    h = latent_size // 2
    k1, k2, k3, k4 = jax.random.split(key, 4)
    # PyTorch Linear weight is (out, in); we store (in, out) for x @ W.
    w1 = jax.random.uniform(k1, (latent_size, h), dtype, -0.1, 0.1)
    b1 = jax.random.uniform(k2, (1, h), dtype, -0.1, 0.1)
    w2 = jax.random.uniform(k3, (h, 1), dtype, -0.1, 0.1)
    b2 = jax.random.uniform(k4, (1, 1), dtype, -0.1, 0.1)
    return w1, b1, w2, b2


def _reference(x, w1, b1, w2, b2):
    """Pure-JAX f32 reference of the same forward pass."""
    x = x.astype(jnp.float32)
    h = x @ w1 + b1
    h = jnp.where(h > 0, h, 0.2 * h)
    return jax.nn.sigmoid(h @ w2 + b2)


if __name__ == "__main__":
    latent_size = 32
    key = jax.random.PRNGKey(0)
    kx, kx2, kx3, kp = jax.random.split(key, 4)
    w1, b1, w2, b2 = init_params(kp, latent_size)

    # Small single-tile call (packed path, p = 128 // 32 = 4).
    x = jax.random.normal(kx, (8, latent_size), jnp.float32)
    out = jax.block_until_ready(mnist_discriminator(x, w1, b1, w2, b2))
    ref = _reference(x, w1, b1, w2, b2)
    assert out.shape == (8, 1)
    # Tolerance accounts for bf16 MXU operands (f32 accumulation).
    assert jnp.allclose(out, ref, atol=1e-2, rtol=1e-2)

    # Multi-tile ragged grid, no padding pass (B=1000, p=4 -> 250 packed rows,
    # small block_b to force ~8 tiles with a partial tail tile).
    x_big = jax.random.normal(kx2, (1000, latent_size), jnp.float32)
    out_big = jax.block_until_ready(
        mnist_discriminator(x_big, w1, b1, w2, b2, block_b=256))
    ref_big = _reference(x_big, w1, b1, w2, b2)
    assert out_big.shape == (1000, 1)
    assert jnp.allclose(out_big, ref_big, atol=1e-2, rtol=1e-2)

    # bf16 activations at the API boundary (halves streamed bytes; no wrapper astype).
    out_bf = jax.block_until_ready(
        mnist_discriminator(x_big.astype(jnp.bfloat16), w1, b1, w2, b2, block_b=256))
    assert out_bf.shape == (1000, 1)
    assert jnp.allclose(out_bf.astype(jnp.float32), ref_big, atol=2e-2, rtol=2e-2)

    # Batch not divisible by the pack factor -> unpacked fallback path.
    x_odd = jax.random.normal(kx3, (30, latent_size), jnp.float32)
    out_odd = jax.block_until_ready(mnist_discriminator(x_odd, w1, b1, w2, b2))
    assert out_odd.shape == (30, 1)
    assert jnp.allclose(out_odd, _reference(x_odd, w1, b1, w2, b2), atol=1e-2, rtol=1e-2)

    print("KERNEL_OK")
</pallas_src>

<mosaic_0001>
module attributes {stable_mosaic.version = 11 : i64} {
  func.func @_disc_kernel(%arg0: i32, %arg1: memref<2x128xf32, #tpu.memory_space<vmem>>, %arg2: memref<128x64xbf16, #tpu.memory_space<vmem>>, %arg3: memref<1x64xf32, #tpu.memory_space<vmem>>, %arg4: memref<64x4xbf16, #tpu.memory_space<vmem>>, %arg5: memref<1xf32, #tpu.memory_space<smem>>, %arg6: memref<2x4xf32, #tpu.memory_space<vmem>>) attributes {dimension_semantics = [#tpu.dimension_semantics<parallel>], iteration_bounds = array<i64: 1>, scalar_prefetch = 0 : i64, scratch_operands = 0 : i64, tpu.core_type = #tpu.core_type<tc>, window_params = [{transform_indices = @transform_0, window_bounds = array<i64: 2, 128>}, {pipeline_mode = #tpu.pipeline_mode<synchronous>, transform_indices = @transform_1, window_bounds = array<i64: 128, 64>}, {pipeline_mode = #tpu.pipeline_mode<synchronous>, transform_indices = @transform_2, window_bounds = array<i64: 1, 64>}, {pipeline_mode = #tpu.pipeline_mode<synchronous>, transform_indices = @transform_3, window_bounds = array<i64: 64, 4>}, {transform_indices = @transform_4, window_bounds = array<i64: 1>}, {transform_indices = @transform_5, window_bounds = array<i64: 2, 4>}]} {
    %c0 = arith.constant 0 : index
    %c0_0 = arith.constant 0 : index
    %0 = vector.load %arg1[%c0, %c0_0] : memref<2x128xf32, #tpu.memory_space<vmem>>, vector<2x128xf32>
    %1 = arith.truncf %0 : vector<2x128xf32> to vector<2x128xbf16>
    %c0_1 = arith.constant 0 : index
    %c0_2 = arith.constant 0 : index
    %2 = vector.load %arg2[%c0_1, %c0_2] : memref<128x64xbf16, #tpu.memory_space<vmem>>, vector<128x64xbf16>
    %cst = arith.constant dense<0.000000e+00> : vector<2x64xf32>
    %3 = tpu.matmul %1, %2, %cst {dimension_numbers = #tpu.dot_dimension_numbers<[1], [0], [0], [1], [0, 0, 1, 1], [], []>} : vector<2x128xbf16>, vector<128x64xbf16>, vector<2x64xf32> -> vector<2x64xf32>
    %c0_3 = arith.constant 0 : index
    %c0_4 = arith.constant 0 : index
    %4 = vector.load %arg3[%c0_3, %c0_4] : memref<1x64xf32, #tpu.memory_space<vmem>>, vector<1x64xf32>
    %5 = vector.broadcast %4 : vector<1x64xf32> to vector<2x64xf32>
    %6 = arith.addf %3, %5 : vector<2x64xf32>
    %cst_5 = arith.constant 0.000000e+00 : f32
    %7 = vector.broadcast %cst_5 : f32 to vector<2x64xf32>
    %8 = arith.cmpf ogt, %6, %7 : vector<2x64xf32>
    %cst_6 = arith.constant 2.000000e-01 : f32
    %9 = vector.broadcast %cst_6 : f32 to vector<2x64xf32>
    %10 = arith.mulf %9, %6 : vector<2x64xf32>
    %11 = arith.select %8, %6, %10 : vector<2x64xi1>, vector<2x64xf32>
    %12 = arith.truncf %11 : vector<2x64xf32> to vector<2x64xbf16>
    %c0_7 = arith.constant 0 : index
    %c0_8 = arith.constant 0 : index
    %13 = vector.load %arg4[%c0_7, %c0_8] : memref<64x4xbf16, #tpu.memory_space<vmem>>, vector<64x4xbf16>
    %cst_9 = arith.constant dense<0.000000e+00> : vector<2x4xf32>
    %14 = tpu.matmul %12, %13, %cst_9 {dimension_numbers = #tpu.dot_dimension_numbers<[1], [0], [0], [1], [0, 0, 1, 1], [], []>} : vector<2x64xbf16>, vector<64x4xbf16>, vector<2x4xf32> -> vector<2x4xf32>
    %c0_10 = arith.constant 0 : index
    %15 = memref.load %arg5[%c0_10] : memref<1xf32, #tpu.memory_space<smem>>
    %16 = vector.broadcast %15 : f32 to vector<2x4xf32>
    %17 = arith.addf %14, %16 : vector<2x4xf32>
    %18 = arith.negf %17 : vector<2x4xf32>
    %19 = math.exp %18 : vector<2x4xf32>
    %cst_11 = arith.constant 1.000000e+00 : f32
    %20 = vector.broadcast %cst_11 : f32 to vector<2x4xf32>
    %21 = arith.addf %20, %19 : vector<2x4xf32>
    %22 = arith.divf %20, %21 : vector<2x4xf32>
    %c0_12 = arith.constant 0 : index
    %c0_13 = arith.constant 0 : index
    %23 = vector.load %arg6[%c0_12, %c0_13] : memref<2x4xf32, #tpu.memory_space<vmem>>, vector<2x4xf32>
    tpu.vector_store %arg6[%c0_12, %c0_13], %22 {strides = array<i32>} : memref<2x4xf32, #tpu.memory_space<vmem>>, vector<2x4xf32>,
    return
  }
  func.func @transform_0(%arg0: i32) -> (i32, i32) {
    %c0_i32 = arith.constant 0 : i32
    %c0_i32_0 = arith.constant 0 : i32
    return %arg0, %c0_i32 : i32, i32
  }
  func.func @transform_1(%arg0: i32) -> (i32, i32) {
    %c0_i32 = arith.constant 0 : i32
    %c0_i32_0 = arith.constant 0 : i32
    %c0_i32_1 = arith.constant 0 : i32
    return %c0_i32, %c0_i32_0 : i32, i32
  }
  func.func @transform_2(%arg0: i32) -> (i32, i32) {
    %c0_i32 = arith.constant 0 : i32
    %c0_i32_0 = arith.constant 0 : i32
    %c0_i32_1 = arith.constant 0 : i32
    return %c0_i32, %c0_i32_0 : i32, i32
  }
  func.func @transform_3(%arg0: i32) -> (i32, i32) {
    %c0_i32 = arith.constant 0 : i32
    %c0_i32_0 = arith.constant 0 : i32
    %c0_i32_1 = arith.constant 0 : i32
    return %c0_i32, %c0_i32_0 : i32, i32
  }
  func.func @transform_4(%arg0: i32) -> i32 {
    %c0_i32 = arith.constant 0 : i32
    %c0_i32_0 = arith.constant 0 : i32
    return %c0_i32 : i32
  }
  func.func @transform_5(%arg0: i32) -> (i32, i32) {
    %c0_i32 = arith.constant 0 : i32
    %c0_i32_0 = arith.constant 0 : i32
    return %arg0, %c0_i32 : i32, i32
  }
}

</mosaic_0001>

<llo_original>
// kernel: tpu_custom_call.1
$region0: #{tpu_custom_call.1}
  #allocation0 [shape = 'u32[]', space=smem, size = 0x4, offset = 0x4, fixed_abs, tag = 'smem constant byte address 0x4 - core index']
  #allocation1 [shape = 'u32[144,128]{1,0:T(1,128)}', space=vmem, size = 0x12000, scoped, tag = 'internal scratch']
  #allocation2 [shape = 'f32[1]{0:T(128)S(6)}', space=smem, size = 0x200, scoped, tag = 'scoped memory for tpu_custom_call.1']
  %s0 = inlined_call_operand.vmem [shape: f32[2,128], index: 0, kind: input, shape index: {}]
  %s1 = inlined_call_operand.vmem [shape: bf16[128,64], index: 1, kind: input, shape index: {}]
  %s2 = inlined_call_operand.vmem [shape: f32[1,64], index: 2, kind: input, shape index: {}]
  %s3 = inlined_call_operand.vmem [shape: bf16[64,4], index: 3, kind: input, shape index: {}]
  %s4 = inlined_call_operand.<no memory space> [shape: f32[1], index: 4, kind: input, shape index: {}]
  %s5 = inlined_call_operand.hbm [shape: f32[2,4], index: 5, kind: output, shape index: {}]
  %s6 = sld [smem:[#allocation0]]
  $region30: #{tpu_custom_call.1} parent=0
    _
  %s8 = ssub.s32 1, %s6
  %s9 = scalar_select 0, %s8, %s6
  %10 = sst [smem:[#allocation2]] %s4
  $region1: #{tpu_custom_call.1} parent=0
    #allocation3 [shape = 'u8[1024]{0}', space=vmem, size = 0x400, scoped, tag = 'output window, operand 0, single buffered']
    #allocation4 [shape = 's32[1]{0}', space=sflag, size = 0x4, scoped, tag = 'scoped memory for tpu_custom_call.1']
    %11 = vsyncpa [#allocation4], 0
    // Predicated region
    $region2: #{tpu_custom_call.1} parent=1 // pred_check
      _
    $region3: #{tpu_custom_call.1} parent=1 // pred_check_branch
      %13 = sbr.rel (0) target = $region5
    $region4: #{tpu_custom_call.1} parent=1 // pred_region
      _
    $region5: #{tpu_custom_call.1} parent=1 // pred_fallthru
      _
    // Predicated region
    $region6: #{tpu_custom_call.1} parent=1 // pred_check
      _
    $region7: #{tpu_custom_call.1} parent=1 // pred_check_branch
      %15 = sbr.rel (0) target = $region9
    $region8: #{tpu_custom_call.1} parent=1 // pred_region
      _
    $region9: #{tpu_custom_call.1} parent=1 // pred_fallthru
      _
    // Predicated region
    $region10: #{tpu_custom_call.1} parent=1 // pred_check
      _
    $region11: #{tpu_custom_call.1} parent=1 // pred_check_branch
      %17 = sbr.rel (0) target = $region13
    $region12: #{tpu_custom_call.1} parent=1 // pred_region
      _
    $region13: #{tpu_custom_call.1} parent=1 // pred_fallthru
      _
    // Predicated region
    $region14: #{tpu_custom_call.1} parent=1 // pred_check
      _
    $region15: #{tpu_custom_call.1} parent=1 // pred_check_branch
      %19 = sbr.rel (0) target = $region17
    $region16: #{tpu_custom_call.1} parent=1 // pred_region
      _
    $region17: #{tpu_custom_call.1} parent=1 // pred_fallthru
      _
    // Predicated region
    $region18: #{tpu_custom_call.1} parent=1 // pred_check
      _
    $region19: #{tpu_custom_call.1} parent=1 // pred_check_branch
      %21 = sbr.rel (0) target = $region21
    $region20: #{tpu_custom_call.1} parent=1 // pred_region
      _
    $region21: #{tpu_custom_call.1} parent=1 // pred_fallthru
      _
    %v23 = vld [vmem:[%s0] sm:$0x3]
    %v24 = vpack.c.bf16 %v23, %v23
    %v25 = vld [vmem:[%s1] sm:$0xf]
    %v26 = vld [vmem:[%s1 + $0x4] sm:$0xf]
    %v27 = vld [vmem:[%s1 + $0x8] sm:$0xf]
    %v28 = vld [vmem:[%s1 + $0xc] sm:$0xf]
    %v29 = vld [vmem:[%s1 + $0x10] sm:$0xf]
    %v30 = vld [vmem:[%s1 + $0x14] sm:$0xf]
    %v31 = vld [vmem:[%s1 + $0x18] sm:$0xf]
    %v32 = vld [vmem:[%s1 + $0x1c] sm:$0xf]
    %v33 = vld [vmem:[%s1 + $0x20] sm:$0xf]
    %v34 = vld [vmem:[%s1 + $0x24] sm:$0xf]
    %v35 = vld [vmem:[%s1 + $0x28] sm:$0xf]
    %v36 = vld [vmem:[%s1 + $0x2c] sm:$0xf]
    %v37 = vld [vmem:[%s1 + $0x30] sm:$0xf]
    %v38 = vld [vmem:[%s1 + $0x34] sm:$0xf]
    %v39 = vld [vmem:[%s1 + $0x38] sm:$0xf]
    %v40 = vld [vmem:[%s1 + $0x3c] sm:$0xf]
    %v41 = vld [vmem:[%s2] sm:$0x1]
    %v43 = vlaneseq
    %v44 = vshrl.u32 %v43, 7
    %v45 = vsub.s32 0, %v44
    %v46 = vrot.slane %v41, %v45
    %v64 = vunpack.c.l.b16 %v25
    %v65 = vunpack.c.l.b16 %v26
    %v66 = vunpack.c.l.b16 %v27
    %v67 = vunpack.c.l.b16 %v28
    %v68 = vunpack.c.l.b16 %v29
    %v69 = vunpack.c.l.b16 %v30
    %v70 = vunpack.c.l.b16 %v31
    %v71 = vunpack.c.l.b16 %v32
    %v72 = vunpack.c.l.b16 %v33
    %v73 = vunpack.c.l.b16 %v34
    %v74 = vunpack.c.l.b16 %v35
    %v75 = vunpack.c.l.b16 %v36
    %v76 = vunpack.c.l.b16 %v37
    %v77 = vunpack.c.l.b16 %v38
    %v78 = vunpack.c.l.b16 %v39
    %v79 = vunpack.c.l.b16 %v40
    %v80 = vpack.c.b16 %v65, %v64
    %v81 = vpack.c.b16 %v67, %v66
    %v82 = vpack.c.b16 %v69, %v68
    %v83 = vpack.c.b16 %v71, %v70
    %v84 = vpack.c.b16 %v73, %v72
    %v85 = vpack.c.b16 %v75, %v74
    %v86 = vpack.c.b16 %v77, %v76
    %v87 = vpack.c.b16 %v79, %v78
    %96 = vmatprep.subr.bf16.mxu0 0
    %97 = vmatpush1.bf16.msra.mxu0 %v87
    %98 = vmatprep.subr.bf16.mxu0 0
    %99 = vmatpush1.bf16.msra.mxu0 %v86
    %100 = vmatprep.subr.bf16.mxu0 0
    %101 = vmatpush1.bf16.msra.mxu0 %v85
    %102 = vmatprep.subr.bf16.mxu0 0
    %103 = vmatpush1.bf16.msra.mxu0 %v84
    %104 = vmatprep.subr.bf16.mxu0 0
    %105 = vmatpush1.bf16.msra.mxu0 %v83
    %106 = vmatprep.subr.bf16.mxu0 0
    %107 = vmatpush1.bf16.msra.mxu0 %v82
    %108 = vmatprep.subr.bf16.mxu0 0
    %109 = vmatpush1.bf16.msra.mxu0 %v81
    %110 = vmatprep.subr.bf16.mxu0 0
    %111 = vmatpush1.bf16.msra.mxu0 %v80
    %112 = vmatprep.subr.bf16.mxu0 0
    %113 = vmatpush2.bf16.msra.mxu0 0
    %114 = vmatprep.subr.bf16.mxu0 0
    %115 = vmatpush2.bf16.msra.mxu0 0
    %116 = vmatprep.subr.bf16.mxu0 0
    %117 = vmatpush2.bf16.msra.mxu0 0
    %118 = vmatprep.subr.bf16.mxu0 0
    %119 = vmatpush2.bf16.msra.mxu0 0
    %120 = vmatprep.subr.bf16.mxu0 0
    %121 = vmatpush2.bf16.msra.mxu0 0
    %122 = vmatprep.subr.bf16.mxu0 0
    %123 = vmatpush2.bf16.msra.mxu0 0
    %124 = vmatprep.subr.bf16.mxu0 0
    %125 = vmatpush2.bf16.msra.mxu0 0
    %126 = vmatprep.subr.bf16.mxu0 0
    %127 = vmatpush2.bf16.msra.mxu0 0
    %128 = vmatprep.mubr.bf16.mxu0 0
    %129 = vmatmul.mubr.bf16.gmra.mxu0 %v24
    %v130 = vpop.f32.mrf.mxu0
    %v131 = vadd.f32 %v46, %v130
    %v132 = vpop.f32.mrf.mxu0
    %v133 = vpop.f32.mrf.mxu0
    %v134 = vpop.f32.mrf.mxu0
    %135 = vdwg.mxu0
    %vm136 = vcmp.gt.f32.partialorder %v131, 0.0
    %v137 = vmul.f32 %v131, 0.2
    %v138 = vsel %vm136, %v131, %v137
    %v139 = vpack.c.bf16 %v138, %v138
    %v140 = vld [vmem:[%s3] sm:$0xf]
    %v141 = vld [vmem:[%s3 + $0x4] sm:$0xf]
    %v142 = vld [vmem:[%s3 + $0x8] sm:$0xf]
    %v143 = vld [vmem:[%s3 + $0xc] sm:$0xf]
    %v144 = vld [vmem:[%s3 + $0x10] sm:$0xf]
    %v145 = vld [vmem:[%s3 + $0x14] sm:$0xf]
    %v146 = vld [vmem:[%s3 + $0x18] sm:$0xf]
    %v147 = vld [vmem:[%s3 + $0x1c] sm:$0xf]
    %s148 = sld [smem:[#allocation2]]
    %v149 = vstv %s148
    %v158 = vunpack.c.l.b16 %v140
    %v159 = vunpack.c.l.b16 %v141
    %v160 = vunpack.c.l.b16 %v142
    %v161 = vunpack.c.l.b16 %v143
    %v162 = vunpack.c.l.b16 %v144
    %v163 = vunpack.c.l.b16 %v145
    %v164 = vunpack.c.l.b16 %v146
    %v165 = vunpack.c.l.b16 %v147
    %v166 = vpack.c.b16 %v159, %v158
    %v167 = vpack.c.b16 %v161, %v160
    %v168 = vpack.c.b16 %v163, %v162
    %v169 = vpack.c.b16 %v165, %v164
    %vm174 = vcmask 523264
    %v176 = vsel %vm174, %v139, 0
    %178 = vmatprep.subr.bf16.mxu0 0
    %179 = vmatpush1.bf16.msra.mxu0 0
    %180 = vmatprep.subr.bf16.mxu0 0
    %181 = vmatpush1.bf16.msra.mxu0 0
    %182 = vmatprep.subr.bf16.mxu0 0
    %183 = vmatpush1.bf16.msra.mxu0 0
    %184 = vmatprep.subr.bf16.mxu0 0
    %185 = vmatpush1.bf16.msra.mxu0 0
    %186 = vmatprep.subr.bf16.mxu0 0
    %187 = vmatpush1.bf16.msra.mxu0 %v169
    %188 = vmatprep.subr.bf16.mxu0 0
    %189 = vmatpush1.bf16.msra.mxu0 %v168
    %190 = vmatprep.subr.bf16.mxu0 0
    %191 = vmatpush1.bf16.msra.mxu0 %v167
    %192 = vmatprep.subr.bf16.mxu0 0
    %193 = vmatpush1.bf16.msra.mxu0 %v166
    %194 = vmatprep.subr.bf16.mxu0 0
    %195 = vmatpush2.bf16.msra.mxu0 0
    %196 = vmatprep.subr.bf16.mxu0 0
    %197 = vmatpush2.bf16.msra.mxu0 0
    %198 = vmatprep.subr.bf16.mxu0 0
    %199 = vmatpush2.bf16.msra.mxu0 0
    %200 = vmatprep.subr.bf16.mxu0 0
    %201 = vmatpush2.bf16.msra.mxu0 0
    %202 = vmatprep.subr.bf16.mxu0 0
    %203 = vmatpush2.bf16.msra.mxu0 0
    %204 = vmatprep.subr.bf16.mxu0 0
    %205 = vmatpush2.bf16.msra.mxu0 0
    %206 = vmatprep.subr.bf16.mxu0 0
    %207 = vmatpush2.bf16.msra.mxu0 0
    %208 = vmatprep.subr.bf16.mxu0 0
    %209 = vmatpush2.bf16.msra.mxu0 0
    %210 = vmatprep.mubr.bf16.mxu0 0
    %211 = vmatmul.mubr.bf16.gmra.mxu0 %v176
    %v212 = vpop.f32.mrf.mxu0
    %v213 = vadd.f32 %v149, %v212
    %v214 = vpop.f32.mrf.mxu0
    %v215 = vpop.f32.mrf.mxu0
    %v216 = vpop.f32.mrf.mxu0
    %217 = vdwg.mxu0
    %v218 = vxor.u32 %v213, 2147483648
    %v219 = vmul.f32 %v218, 1.442695
    %v220 = vpow.pop %v219
    %v221 = vadd.f32 %v220, 1.0
    %v222 = vrcp.pop %v221
    %v223 = vmul.f32 1.0, %v222
    %vm224 = vcmask 25600
    %225 = vst.msk [vmem:[#allocation3] sm:$0x3] %vm224, %v223
    // Predicated region
    $region22: #{tpu_custom_call.1} parent=1 // pred_check
      _
    $region23: #{tpu_custom_call.1} parent=1 // pred_check_branch
      %227 = sbr.rel (0) target = $region25
    $region24: #{tpu_custom_call.1} parent=1 // pred_region
      %s229 = ssub.s32 32, 32
      %230 = vsyncadd [#allocation4], %s229
      %s232 = sshll.u32 [#allocation3], 4
      %s233 = int_to_ptr.vmem [resolvable:$true] %s232
      %235 = dma.vmem_to_hbm [thread:$0]  %s233, 32, %s5, [#allocation4]
    $region25: #{tpu_custom_call.1} parent=1 // pred_fallthru
      _
    // Predicated region
    $region26: #{tpu_custom_call.1} parent=1 // pred_check
      _
    $region27: #{tpu_custom_call.1} parent=1 // pred_check_branch
      %237 = sbr.rel (0) target = $region29
    $region28: #{tpu_custom_call.1} parent=1 // pred_region
      %238 = dma.done [#allocation4], 32
    $region29: #{tpu_custom_call.1} parent=1 // pred_fallthru
      _
    %239 = vsyncpa [#allocation4], 1

</llo_original>
